<compile_context>
chip_gen: v6e
topology: v6e:2x2x1
jax: 0.10.0
libtpu: 0.0.40
codegen_flags: <defaults>
</compile_context>

<pallas_src>
import functools

import jax
import jax.numpy as jnp
from jax import lax
from jax.experimental import pallas as pl
from jax.experimental.pallas import tpu as pltpu


def _round_up(x, m):
    return ((x + m - 1) // m) * m


# ---------------------------------------------------------------------------
# Kernel A: fused forward+reverse edge message MLP (one edge block per step).
# ---------------------------------------------------------------------------
def _edge_message_kernel(fs_ref, ts_ref, ef_ref,
                         wf_ref, wt_ref, we_ref, b1_ref, w2_ref, b2_ref,
                         msg_ref):
    # Split-weight equivalent of concat([from, to, ef]) @ W1 for the forward
    # net and concat([to, from, ef]) @ W1' for the reverse net, stacked on the
    # lane axis (lanes [0:H) forward hidden, [H:2H) reverse hidden).
    h = (jnp.dot(fs_ref[...], wf_ref[...], preferred_element_type=jnp.float32)
         + jnp.dot(ts_ref[...], wt_ref[...], preferred_element_type=jnp.float32)
         + jnp.dot(ef_ref[...], we_ref[...], preferred_element_type=jnp.float32)
         + b1_ref[...])
    h = jnp.maximum(h, 0.0)                     # relu in f32 (v5e VPU has no bf16)
    msg = (jnp.dot(h.astype(jnp.bfloat16), w2_ref[...],
                   preferred_element_type=jnp.float32) + b2_ref[...])
    msg_ref[...] = msg.astype(msg_ref.dtype)    # bf16 inter-kernel buffer


# ---------------------------------------------------------------------------
# Kernel B: scatter-add messages to nodes + residual node-update MLP.
# ---------------------------------------------------------------------------
def _scatter_update_kernel(fi_ref, ti_ref, msg_ref, ns_ref,
                           u1a_ref, u1n_ref, c1_ref, u2_ref, c2_ref,
                           out_ref, acc_ref, *, tn, mp):
    i = pl.program_id(0)            # node block (parallel)
    k = pl.program_id(1)            # edge block (reduction, arbitrary)

    @pl.when(k == 0)
    def _():
        acc_ref[...] = jnp.zeros_like(acc_ref)

    fi = fi_ref[...]                # [1, TE] int32 (-1 => padded edge)
    ti = ti_ref[...]                # [1, TE]
    te = fi.shape[1]

    # One-hot scatter masks for this node block (exact in bf16: values 0/1).
    bid = lax.broadcasted_iota(jnp.int32, (tn, te), 0) + i * tn
    mt_b = (ti == bid).astype(jnp.bfloat16)     # forward messages go to to_idx
    mf_b = (fi == bid).astype(jnp.bfloat16)     # reverse messages go to from_idx

    msg = msg_ref[...]                          # [TE, 2*mp] bf16
    acc_ref[...] += (
        jnp.dot(mt_b, msg[:, :mp], preferred_element_type=jnp.float32)
        + jnp.dot(mf_b, msg[:, mp:], preferred_element_type=jnp.float32))

    # Residual node update on the last edge block (output block is resident
    # across k because its index_map is constant in k).
    @pl.when(k == pl.num_programs(1) - 1)
    def _():
        ns_blk = ns_ref[...]                    # [TN, Dp] f32
        h2 = (jnp.dot(acc_ref[...].astype(jnp.bfloat16), u1a_ref[...],
                      preferred_element_type=jnp.float32)
              + jnp.dot(ns_blk.astype(jnp.bfloat16), u1n_ref[...],
                        preferred_element_type=jnp.float32)
              + c1_ref[...])
        h2 = jnp.maximum(h2, 0.0)
        upd = (jnp.dot(h2.astype(jnp.bfloat16), u2_ref[...],
                       preferred_element_type=jnp.float32) + c2_ref[...])
        out_ref[...] = ns_blk + upd


def graph_prop_layer(node_states, from_idx, to_idx, edge_features, params,
                     *, edge_tile=256, node_tile=128,
                     vmem_limit_bytes=48 * 1024 * 1024):
    """Pallas-backed GraphPropLayer.forward (residual update, reverse dir on)."""
    n_nodes, d = node_states.shape
    n_edges = from_idx.shape[0]
    ef_dim = edge_features.shape[1]

    if n_nodes == 0:
        return jnp.zeros((0, d), jnp.float32)

    w1f, b1f, w2f, b2f = params["w1f"], params["b1f"], params["w2f"], params["b2f"]
    w1r, b1r, w2r, b2r = params["w1r"], params["b1r"], params["w2r"], params["b2r"]
    u1, c1, u2, c2 = params["u1"], params["c1"], params["u2"], params["c2"]
    h_dim = w1f.shape[1]            # edge hidden size
    m_dim = w2f.shape[1]            # message size (per direction)
    nh_dim = u1.shape[1]            # node hidden size

    # Lane-dense padded dims (all multiples of 128) => no masked partial stores.
    dp = _round_up(d, 128)
    efp = _round_up(ef_dim, 128)
    hp = _round_up(2 * h_dim, 128)          # fwd + rev hidden stacked on lanes
    mp = _round_up(m_dim, 128)              # per-direction message width
    nhp = _round_up(nh_dim, 128)

    tn = min(node_tile, _round_up(n_nodes, 8))
    n_pad = _round_up(n_nodes, tn)
    te = min(edge_tile, _round_up(max(n_edges, 1), 128))
    e_pad = _round_up(max(n_edges, 1), te)
    num_nb = n_pad // tn
    num_eb = e_pad // te

    f32, bf16 = jnp.float32, jnp.bfloat16

    def zpad(x, shape, dtype):
        out = jnp.zeros(shape, dtype)
        return out.at[tuple(slice(0, s) for s in x.shape)].set(x.astype(dtype))

    # ---- wrapper-side gather: per-edge endpoint states ----------------------
    from_states = jnp.take(node_states, from_idx, axis=0)
    to_states = jnp.take(node_states, to_idx, axis=0)
    fs_p = zpad(from_states, (e_pad, dp), bf16)
    ts_p = zpad(to_states, (e_pad, dp), bf16)
    ef_p = zpad(edge_features, (e_pad, efp), bf16)
    ns_p = zpad(node_states, (n_pad, dp), f32)
    idx_fill = -jnp.ones((1, e_pad), jnp.int32)     # -1 => padded edge, no scatter
    fi_p = idx_fill.at[0, :n_edges].set(from_idx.astype(jnp.int32))
    ti_p = idx_fill.at[0, :n_edges].set(to_idx.astype(jnp.int32))

    # ---- fused forward+reverse edge net, split per input operand ------------
    # forward input = [from, to, ef];  reverse input = [to, from, ef]
    wf = jnp.zeros((dp, hp), f32)
    wf = wf.at[:d, :h_dim].set(w1f[:d]).at[:d, h_dim:2 * h_dim].set(w1r[d:2 * d])
    wt = jnp.zeros((dp, hp), f32)
    wt = wt.at[:d, :h_dim].set(w1f[d:2 * d]).at[:d, h_dim:2 * h_dim].set(w1r[:d])
    we = jnp.zeros((efp, hp), f32)
    we = we.at[:ef_dim, :h_dim].set(w1f[2 * d:]).at[:ef_dim, h_dim:2 * h_dim].set(w1r[2 * d:])
    b1 = jnp.zeros((1, hp), f32)
    b1 = b1.at[0, :h_dim].set(b1f[0]).at[0, h_dim:2 * h_dim].set(b1r[0])
    w2 = jnp.zeros((hp, 2 * mp), f32)
    w2 = w2.at[:h_dim, :m_dim].set(w2f).at[h_dim:2 * h_dim, mp:mp + m_dim].set(w2r)
    b2 = jnp.zeros((1, 2 * mp), f32)
    b2 = b2.at[0, :m_dim].set(b2f[0]).at[0, mp:mp + m_dim].set(b2r[0])
    wf, wt, we, w2 = wf.astype(bf16), wt.astype(bf16), we.astype(bf16), w2.astype(bf16)

    # ---- node update MLP, split per input operand ([aggregated, node_states])
    u1a = jnp.zeros((mp, nhp), f32).at[:m_dim, :nh_dim].set(u1[:m_dim]).astype(bf16)
    u1n = jnp.zeros((dp, nhp), f32).at[:d, :nh_dim].set(u1[m_dim:m_dim + d]).astype(bf16)
    c1p = jnp.zeros((1, nhp), f32).at[0, :nh_dim].set(c1[0])
    u2p = jnp.zeros((nhp, dp), f32).at[:nh_dim, :d].set(u2).astype(bf16)
    c2p = jnp.zeros((1, dp), f32).at[0, :d].set(c2[0])

    def const_spec(arr):
        return pl.BlockSpec(arr.shape, lambda *_: (0, 0))

    # ======================= kernel A: edge messages ========================
    flops_a = 2 * e_pad * (2 * dp * hp + efp * hp + hp * 2 * mp)
    bytes_a = (2 * (fs_p.size + ts_p.size + ef_p.size
                    + wf.size + wt.size + we.size + w2.size + e_pad * 2 * mp)
               + 4 * (b1.size + b2.size))

    msg = pl.pallas_call(
        _edge_message_kernel,
        out_shape=jax.ShapeDtypeStruct((e_pad, 2 * mp), bf16),
        grid_spec=pltpu.PrefetchScalarGridSpec(
            num_scalar_prefetch=0,
            grid=(num_eb,),
            in_specs=[
                pl.BlockSpec((te, dp), lambda k: (k, 0)),     # from_states block
                pl.BlockSpec((te, dp), lambda k: (k, 0)),     # to_states block
                pl.BlockSpec((te, efp), lambda k: (k, 0)),    # edge feature block
                const_spec(wf), const_spec(wt), const_spec(we), const_spec(b1),
                const_spec(w2), const_spec(b2),
            ],
            out_specs=pl.BlockSpec((te, 2 * mp), lambda k: (k, 0)),
        ),
        compiler_params=pltpu.CompilerParams(
            dimension_semantics=("parallel",),
            vmem_limit_bytes=vmem_limit_bytes),
        cost_estimate=pl.CostEstimate(flops=int(flops_a), transcendentals=0,
                                      bytes_accessed=int(bytes_a)),
    )(fs_p, ts_p, ef_p, wf, wt, we, b1, w2, b2)

    # =============== kernel B: scatter-add + residual node update ===========
    flops_b = (4 * n_pad * e_pad * mp
               + 2 * n_pad * (mp * nhp + dp * nhp + nhp * dp))
    bytes_b = (4 * (fi_p.size + ti_p.size + ns_p.size + c1p.size + c2p.size
                    + n_pad * dp)
               + 2 * (num_nb * msg.size + u1a.size + u1n.size + u2p.size))

    kernel_b = functools.partial(_scatter_update_kernel, tn=tn, mp=mp)
    out_p = pl.pallas_call(
        kernel_b,
        out_shape=jax.ShapeDtypeStruct((n_pad, dp), f32),
        grid_spec=pltpu.PrefetchScalarGridSpec(
            num_scalar_prefetch=0,
            grid=(num_nb, num_eb),
            in_specs=[
                pl.BlockSpec((1, te), lambda i, k: (0, k)),       # from idx block
                pl.BlockSpec((1, te), lambda i, k: (0, k)),       # to idx block
                pl.BlockSpec((te, 2 * mp), lambda i, k: (k, 0)),  # message block
                pl.BlockSpec((tn, dp), lambda i, k: (i, 0)),      # node state block
                const_spec(u1a), const_spec(u1n), const_spec(c1p),
                const_spec(u2p), const_spec(c2p),
            ],
            out_specs=pl.BlockSpec((tn, dp), lambda i, k: (i, 0)),
            scratch_shapes=[pltpu.VMEM((tn, mp), jnp.float32)],
        ),
        compiler_params=pltpu.CompilerParams(
            dimension_semantics=("parallel", "arbitrary"),
            vmem_limit_bytes=vmem_limit_bytes),
        cost_estimate=pl.CostEstimate(flops=int(flops_b), transcendentals=0,
                                      bytes_accessed=int(bytes_b)),
    )(fi_p, ti_p, msg, ns_p, u1a, u1n, c1p, u2p, c2p)

    return out_p[:n_nodes, :d]


# ---------------------------------------------------------------------------
# Pure-JAX reference mirroring the PyTorch module semantics (f32).
# ---------------------------------------------------------------------------
def _reference_forward(node_states, from_idx, to_idx, edge_features, params):
    def mlp2(x, w1, b1, w2, b2):
        h = jnp.maximum(x @ w1 + b1, 0.0)
        return h @ w2 + b2

    n_nodes = node_states.shape[0]

    def prop_once(src_idx, dst_idx, w1, b1, w2, b2):
        src = node_states[src_idx]
        dst = node_states[dst_idx]
        edge_in = jnp.concatenate([src, dst, edge_features], axis=-1)
        msgs = mlp2(edge_in, w1, b1, w2, b2)
        return jnp.zeros((n_nodes, msgs.shape[-1]), msgs.dtype).at[dst_idx].add(msgs)

    agg = prop_once(from_idx, to_idx,
                    params["w1f"], params["b1f"], params["w2f"], params["b2f"])
    agg = agg + prop_once(to_idx, from_idx,
                          params["w1r"], params["b1r"], params["w2r"], params["b2r"])
    node_in = jnp.concatenate([agg, node_states], axis=-1)
    return node_states + mlp2(node_in, params["u1"], params["c1"],
                              params["u2"], params["c2"])


def _init_params(key, node_dim, edge_dim, edge_hidden, node_hidden):
    """Deterministic synthetic parameter init (PyTorch Linear shapes, [in, out])."""
    edge_in = 2 * node_dim + edge_dim
    msg_dim = edge_hidden[-1]
    node_in = msg_dim + node_dim            # prop_type='embedding'
    node_hidden = node_hidden + [node_dim]
    init_scale = 0.1                        # edge_net_init_scale

    def lin(key, fan_in, fan_out, scale):
        kw, kb = jax.random.split(key)
        w = jax.random.uniform(kw, (fan_in, fan_out), jnp.float32, -scale, scale)
        b = jax.random.uniform(kb, (1, fan_out), jnp.float32, -scale, scale)
        return w, b

    keys = jax.random.split(key, 6)
    w1f, b1f = lin(keys[0], edge_in, edge_hidden[0], init_scale)
    w2f, b2f = lin(keys[1], edge_hidden[0], edge_hidden[1], init_scale)
    w1r, b1r = lin(keys[2], edge_in, edge_hidden[0], init_scale)
    w2r, b2r = lin(keys[3], edge_hidden[0], edge_hidden[1], init_scale)
    u1, c1 = lin(keys[4], node_in, node_hidden[0], 1.0 / jnp.sqrt(node_in))
    u2, c2 = lin(keys[5], node_hidden[0], node_hidden[1],
                 1.0 / jnp.sqrt(node_hidden[0]))
    return dict(w1f=w1f, b1f=b1f, w2f=w2f, b2f=b2f,
                w1r=w1r, b1r=b1r, w2r=w2r, b2r=b2r,
                u1=u1, c1=c1, u2=u2, c2=c2)


if __name__ == "__main__":
    key = jax.random.PRNGKey(0)
    n_nodes, n_edges = 16, 32
    node_dim, edge_dim = 16, 8
    edge_hidden = [32, 2 * node_dim]        # last = message dim = 2*node_dim
    node_hidden = [32]

    k1, k2, k3, k4, k5 = jax.random.split(key, 5)
    node_states = jax.random.normal(k1, (n_nodes, node_dim), jnp.float32)
    edge_features = jax.random.normal(k2, (n_edges, edge_dim), jnp.float32)
    from_idx = jax.random.randint(k3, (n_edges,), 0, n_nodes, jnp.int32)
    to_idx = jax.random.randint(k4, (n_edges,), 0, n_nodes, jnp.int32)
    params = _init_params(k5, node_dim, edge_dim, edge_hidden, node_hidden)

    out = graph_prop_layer(node_states, from_idx, to_idx, edge_features, params)
    out = jax.block_until_ready(out)

    ref = _reference_forward(node_states, from_idx, to_idx, edge_features, params)
    assert out.shape == (n_nodes, node_dim)
    # bf16 MXU operands with f32 accumulation => loosened tolerance vs f32 ref.
    assert jnp.allclose(out, ref, atol=3e-2, rtol=3e-2), "mismatch vs JAX reference"

    print("KERNEL_OK")
</pallas_src>

<mosaic_0001>
module attributes {stable_mosaic.version = 11 : i64} {
  func.func @_edge_message_kernel(%arg0: i32, %arg1: memref<128x128xbf16, #tpu.memory_space<vmem>>, %arg2: memref<128x128xbf16, #tpu.memory_space<vmem>>, %arg3: memref<128x128xbf16, #tpu.memory_space<vmem>>, %arg4: memref<128x128xbf16, #tpu.memory_space<vmem>>, %arg5: memref<128x128xbf16, #tpu.memory_space<vmem>>, %arg6: memref<128x128xbf16, #tpu.memory_space<vmem>>, %arg7: memref<1x128xf32, #tpu.memory_space<vmem>>, %arg8: memref<128x256xbf16, #tpu.memory_space<vmem>>, %arg9: memref<1x256xf32, #tpu.memory_space<vmem>>, %arg10: memref<128x256xbf16, #tpu.memory_space<vmem>>) attributes {dimension_semantics = [#tpu.dimension_semantics<parallel>], iteration_bounds = array<i64: 1>, scalar_prefetch = 0 : i64, scratch_operands = 0 : i64, tpu.core_type = #tpu.core_type<tc>, window_params = [{transform_indices = @transform_0, window_bounds = array<i64: 128, 128>}, {transform_indices = @transform_1, window_bounds = array<i64: 128, 128>}, {transform_indices = @transform_2, window_bounds = array<i64: 128, 128>}, {pipeline_mode = #tpu.pipeline_mode<synchronous>, transform_indices = @transform_3, window_bounds = array<i64: 128, 128>}, {pipeline_mode = #tpu.pipeline_mode<synchronous>, transform_indices = @transform_4, window_bounds = array<i64: 128, 128>}, {pipeline_mode = #tpu.pipeline_mode<synchronous>, transform_indices = @transform_5, window_bounds = array<i64: 128, 128>}, {pipeline_mode = #tpu.pipeline_mode<synchronous>, transform_indices = @transform_6, window_bounds = array<i64: 1, 128>}, {pipeline_mode = #tpu.pipeline_mode<synchronous>, transform_indices = @transform_7, window_bounds = array<i64: 128, 256>}, {pipeline_mode = #tpu.pipeline_mode<synchronous>, transform_indices = @transform_8, window_bounds = array<i64: 1, 256>}, {transform_indices = @transform_9, window_bounds = array<i64: 128, 256>}]} {
    %c0 = arith.constant 0 : index
    %c0_0 = arith.constant 0 : index
    %0 = vector.load %arg1[%c0, %c0_0] : memref<128x128xbf16, #tpu.memory_space<vmem>>, vector<128x128xbf16>
    %c0_1 = arith.constant 0 : index
    %c0_2 = arith.constant 0 : index
    %1 = vector.load %arg4[%c0_1, %c0_2] : memref<128x128xbf16, #tpu.memory_space<vmem>>, vector<128x128xbf16>
    %cst = arith.constant dense<0.000000e+00> : vector<128x128xf32>
    %2 = tpu.matmul %0, %1, %cst {dimension_numbers = #tpu.dot_dimension_numbers<[1], [0], [0], [1], [0, 0, 1, 1], [], []>} : vector<128x128xbf16>, vector<128x128xbf16>, vector<128x128xf32> -> vector<128x128xf32>
    %c0_3 = arith.constant 0 : index
    %c0_4 = arith.constant 0 : index
    %3 = vector.load %arg2[%c0_3, %c0_4] : memref<128x128xbf16, #tpu.memory_space<vmem>>, vector<128x128xbf16>
    %c0_5 = arith.constant 0 : index
    %c0_6 = arith.constant 0 : index
    %4 = vector.load %arg5[%c0_5, %c0_6] : memref<128x128xbf16, #tpu.memory_space<vmem>>, vector<128x128xbf16>
    %cst_7 = arith.constant dense<0.000000e+00> : vector<128x128xf32>
    %5 = tpu.matmul %3, %4, %cst_7 {dimension_numbers = #tpu.dot_dimension_numbers<[1], [0], [0], [1], [0, 0, 1, 1], [], []>} : vector<128x128xbf16>, vector<128x128xbf16>, vector<128x128xf32> -> vector<128x128xf32>
    %6 = arith.addf %2, %5 : vector<128x128xf32>
    %c0_8 = arith.constant 0 : index
    %c0_9 = arith.constant 0 : index
    %7 = vector.load %arg3[%c0_8, %c0_9] : memref<128x128xbf16, #tpu.memory_space<vmem>>, vector<128x128xbf16>
    %c0_10 = arith.constant 0 : index
    %c0_11 = arith.constant 0 : index
    %8 = vector.load %arg6[%c0_10, %c0_11] : memref<128x128xbf16, #tpu.memory_space<vmem>>, vector<128x128xbf16>
    %cst_12 = arith.constant dense<0.000000e+00> : vector<128x128xf32>
    %9 = tpu.matmul %7, %8, %cst_12 {dimension_numbers = #tpu.dot_dimension_numbers<[1], [0], [0], [1], [0, 0, 1, 1], [], []>} : vector<128x128xbf16>, vector<128x128xbf16>, vector<128x128xf32> -> vector<128x128xf32>
    %10 = arith.addf %6, %9 : vector<128x128xf32>
    %c0_13 = arith.constant 0 : index
    %c0_14 = arith.constant 0 : index
    %11 = vector.load %arg7[%c0_13, %c0_14] : memref<1x128xf32, #tpu.memory_space<vmem>>, vector<1x128xf32>
    %12 = vector.broadcast %11 : vector<1x128xf32> to vector<128x128xf32>
    %13 = arith.addf %10, %12 : vector<128x128xf32>
    %cst_15 = arith.constant 0.000000e+00 : f32
    %14 = vector.broadcast %cst_15 : f32 to vector<128x128xf32>
    %15 = arith.maximumf %13, %14 : vector<128x128xf32>
    %16 = arith.truncf %15 : vector<128x128xf32> to vector<128x128xbf16>
    %c0_16 = arith.constant 0 : index
    %c0_17 = arith.constant 0 : index
    %17 = vector.load %arg8[%c0_16, %c0_17] : memref<128x256xbf16, #tpu.memory_space<vmem>>, vector<128x256xbf16>
    %cst_18 = arith.constant dense<0.000000e+00> : vector<128x256xf32>
    %18 = tpu.matmul %16, %17, %cst_18 {dimension_numbers = #tpu.dot_dimension_numbers<[1], [0], [0], [1], [0, 0, 1, 1], [], []>} : vector<128x128xbf16>, vector<128x256xbf16>, vector<128x256xf32> -> vector<128x256xf32>
    %c0_19 = arith.constant 0 : index
    %c0_20 = arith.constant 0 : index
    %19 = vector.load %arg9[%c0_19, %c0_20] : memref<1x256xf32, #tpu.memory_space<vmem>>, vector<1x256xf32>
    %20 = vector.broadcast %19 : vector<1x256xf32> to vector<128x256xf32>
    %21 = arith.addf %18, %20 : vector<128x256xf32>
    %22 = arith.truncf %21 : vector<128x256xf32> to vector<128x256xbf16>
    %c0_21 = arith.constant 0 : index
    %c0_22 = arith.constant 0 : index
    %23 = vector.load %arg10[%c0_21, %c0_22] : memref<128x256xbf16, #tpu.memory_space<vmem>>, vector<128x256xbf16>
    tpu.vector_store %arg10[%c0_21, %c0_22], %22 {strides = array<i32>} : memref<128x256xbf16, #tpu.memory_space<vmem>>, vector<128x256xbf16>,
    return
  }
  func.func @transform_0(%arg0: i32) -> (i32, i32) {
    %c0_i32 = arith.constant 0 : i32
    %c0_i32_0 = arith.constant 0 : i32
    return %arg0, %c0_i32 : i32, i32
  }
  func.func @transform_1(%arg0: i32) -> (i32, i32) {
    %c0_i32 = arith.constant 0 : i32
    %c0_i32_0 = arith.constant 0 : i32
    return %arg0, %c0_i32 : i32, i32
  }
  func.func @transform_2(%arg0: i32) -> (i32, i32) {
    %c0_i32 = arith.constant 0 : i32
    %c0_i32_0 = arith.constant 0 : i32
    return %arg0, %c0_i32 : i32, i32
  }
  func.func @transform_3(%arg0: i32) -> (i32, i32) {
    %c0_i32 = arith.constant 0 : i32
    %c0_i32_0 = arith.constant 0 : i32
    %c0_i32_1 = arith.constant 0 : i32
    return %c0_i32, %c0_i32_0 : i32, i32
  }
  func.func @transform_4(%arg0: i32) -> (i32, i32) {
    %c0_i32 = arith.constant 0 : i32
    %c0_i32_0 = arith.constant 0 : i32
    %c0_i32_1 = arith.constant 0 : i32
    return %c0_i32, %c0_i32_0 : i32, i32
  }
  func.func @transform_5(%arg0: i32) -> (i32, i32) {
    %c0_i32 = arith.constant 0 : i32
    %c0_i32_0 = arith.constant 0 : i32
    %c0_i32_1 = arith.constant 0 : i32
    return %c0_i32, %c0_i32_0 : i32, i32
  }
  func.func @transform_6(%arg0: i32) -> (i32, i32) {
    %c0_i32 = arith.constant 0 : i32
    %c0_i32_0 = arith.constant 0 : i32
    %c0_i32_1 = arith.constant 0 : i32
    return %c0_i32, %c0_i32_0 : i32, i32
  }
  func.func @transform_7(%arg0: i32) -> (i32, i32) {
    %c0_i32 = arith.constant 0 : i32
    %c0_i32_0 = arith.constant 0 : i32
    %c0_i32_1 = arith.constant 0 : i32
    return %c0_i32, %c0_i32_0 : i32, i32
  }
  func.func @transform_8(%arg0: i32) -> (i32, i32) {
    %c0_i32 = arith.constant 0 : i32
    %c0_i32_0 = arith.constant 0 : i32
    %c0_i32_1 = arith.constant 0 : i32
    return %c0_i32, %c0_i32_0 : i32, i32
  }
  func.func @transform_9(%arg0: i32) -> (i32, i32) {
    %c0_i32 = arith.constant 0 : i32
    %c0_i32_0 = arith.constant 0 : i32
    return %arg0, %c0_i32 : i32, i32
  }
}

</mosaic_0001>

<llo_original>
// kernel: tpu_custom_call.1
$region0: #{tpu_custom_call.1}
  #allocation0 [shape = 'u32[]', space=smem, size = 0x4, offset = 0x4, fixed_abs, tag = 'smem constant byte address 0x4 - core index']
  #allocation1 [shape = 'u32[144,128]{1,0:T(1,128)}', space=vmem, size = 0x12000, scoped, tag = 'internal scratch']
  %s0 = inlined_call_operand.hbm [shape: bf16[128,128], index: 0, kind: input, shape index: {}]
  %s1 = inlined_call_operand.hbm [shape: bf16[128,128], index: 1, kind: input, shape index: {}]
  %s2 = inlined_call_operand.hbm [shape: bf16[128,128], index: 2, kind: input, shape index: {}]
  %s3 = inlined_call_operand.hbm [shape: bf16[128,128], index: 3, kind: input, shape index: {}]
  %s4 = inlined_call_operand.hbm [shape: bf16[128,128], index: 4, kind: input, shape index: {}]
  %s5 = inlined_call_operand.hbm [shape: bf16[128,128], index: 5, kind: input, shape index: {}]
  %s6 = inlined_call_operand.vmem [shape: f32[1,128], index: 6, kind: input, shape index: {}]
  %s7 = inlined_call_operand.hbm [shape: bf16[128,256], index: 7, kind: input, shape index: {}]
  %s8 = inlined_call_operand.vmem [shape: f32[1,256], index: 8, kind: input, shape index: {}]
  %s9 = inlined_call_operand.hbm [shape: bf16[128,256], index: 9, kind: output, shape index: {}]
  %s10 = sld [smem:[#allocation0]]
  $region74: #{tpu_custom_call.1} parent=0
    _
  %s12 = ssub.s32 1, %s10
  %s13 = scalar_select 0, %s12, %s10
  $region1: #{tpu_custom_call.1} parent=0
    #allocation2 [shape = 'u8[32768]{0}', space=vmem, size = 0x8000, scoped, tag = 'input window, operand 0, single buffered']
    #allocation3 [shape = 's32[1]{0}', space=sflag, size = 0x4, scoped, tag = 'scoped memory for tpu_custom_call.1']
    #allocation4 [shape = 's32[1]{0}', space=sflag, size = 0x4, scoped, tag = 'scoped memory for tpu_custom_call.1']
    #allocation5 [shape = 'u8[32768]{0}', space=vmem, size = 0x8000, scoped, tag = 'input window, operand 1, single buffered']
    #allocation6 [shape = 's32[1]{0}', space=sflag, size = 0x4, scoped, tag = 'scoped memory for tpu_custom_call.1']
    #allocation7 [shape = 'u8[32768]{0}', space=vmem, size = 0x8000, scoped, tag = 'input window, operand 2, single buffered']
    #allocation8 [shape = 'u8[32768]{0}', space=vmem, size = 0x8000, scoped, tag = 'input window, operand 3, single buffered']
    #allocation9 [shape = 's32[1]{0}', space=sflag, size = 0x4, scoped, tag = 'scoped memory for tpu_custom_call.1']
    #allocation10 [shape = 'u8[32768]{0}', space=vmem, size = 0x8000, scoped, tag = 'input window, operand 4, single buffered']
    #allocation11 [shape = 'u8[32768]{0}', space=vmem, size = 0x8000, scoped, tag = 'input window, operand 5, single buffered']
    #allocation12 [shape = 's32[1]{0}', space=sflag, size = 0x4, scoped, tag = 'scoped memory for tpu_custom_call.1']
    #allocation13 [shape = 'u8[65536]{0}', space=vmem, size = 0x10000, scoped, tag = 'input window, operand 7, single buffered']
    #allocation14 [shape = 'u8[65536]{0}', space=vmem, size = 0x10000, scoped, tag = 'output window, operand 0, single buffered']
    %14 = vsyncpa [#allocation3], 0
    %15 = vsyncpa [#allocation6], 0
    %16 = vsyncpa [#allocation9], 0
    %17 = vsyncpa [#allocation12], 0
    %18 = vsyncpa [#allocation4], 0
    // Predicated region
    $region2: #{tpu_custom_call.1} parent=1 // pred_check
      _
    $region3: #{tpu_custom_call.1} parent=1 // pred_check_branch
      %20 = sbr.rel (0) target = $region5
    $region4: #{tpu_custom_call.1} parent=1 // pred_region
      %s22 = ssub.s32 1024, 1024
      %23 = vsyncadd [#allocation3], %s22
      %s24 = sshll.u32 [#allocation2], 4
      %s25 = int_to_ptr.vmem [resolvable:$true] %s24
      %30 = dma.hbm_to_vmem [thread:$0]  %s0, 1024, %s25, [#allocation3], 64, 64, 4
    $region5: #{tpu_custom_call.1} parent=1 // pred_fallthru
      _
    // Predicated region
    $region6: #{tpu_custom_call.1} parent=1 // pred_check
      _
    $region7: #{tpu_custom_call.1} parent=1 // pred_check_branch
      %32 = sbr.rel (0) target = $region9
    $region8: #{tpu_custom_call.1} parent=1 // pred_region
      %s34 = ssub.s32 1024, 1024
      %35 = vsyncadd [#allocation6], %s34
      %s36 = sshll.u32 [#allocation5], 4
      %s37 = int_to_ptr.vmem [resolvable:$true] %s36
      %42 = dma.hbm_to_vmem [thread:$0]  %s1, 1024, %s37, [#allocation6], 64, 64, 4
    $region9: #{tpu_custom_call.1} parent=1 // pred_fallthru
      _
    // Predicated region
    $region10: #{tpu_custom_call.1} parent=1 // pred_check
      _
    $region11: #{tpu_custom_call.1} parent=1 // pred_check_branch
      %44 = sbr.rel (0) target = $region13
    $region12: #{tpu_custom_call.1} parent=1 // pred_region
      %s46 = ssub.s32 1024, 1024
      %47 = vsyncadd [#allocation6], %s46
      %s48 = sshll.u32 [#allocation7], 4
      %s49 = int_to_ptr.vmem [resolvable:$true] %s48
      %54 = dma.hbm_to_vmem [thread:$0]  %s2, 1024, %s49, [#allocation6], 64, 64, 4
    $region13: #{tpu_custom_call.1} parent=1 // pred_fallthru
      _
    // Predicated region
    $region14: #{tpu_custom_call.1} parent=1 // pred_check
      _
    $region15: #{tpu_custom_call.1} parent=1 // pred_check_branch
      %56 = sbr.rel (0) target = $region17
    $region16: #{tpu_custom_call.1} parent=1 // pred_region
      %s58 = ssub.s32 1024, 1024
      %59 = vsyncadd [#allocation9], %s58
      %s60 = sshll.u32 [#allocation8], 4
      %s61 = int_to_ptr.vmem [resolvable:$true] %s60
      %66 = dma.hbm_to_vmem [thread:$0]  %s3, 1024, %s61, [#allocation9], 64, 64, 4
    $region17: #{tpu_custom_call.1} parent=1 // pred_fallthru
      _
    // Predicated region
    $region18: #{tpu_custom_call.1} parent=1 // pred_check
      _
    $region19: #{tpu_custom_call.1} parent=1 // pred_check_branch
      %68 = sbr.rel (0) target = $region21
    $region20: #{tpu_custom_call.1} parent=1 // pred_region
      %s70 = ssub.s32 1024, 1024
      %71 = vsyncadd [#allocation9], %s70
      %s72 = sshll.u32 [#allocation10], 4
      %s73 = int_to_ptr.vmem [resolvable:$true] %s72
      %78 = dma.hbm_to_vmem [thread:$0]  %s4, 1024, %s73, [#allocation9], 64, 64, 4
    $region21: #{tpu_custom_call.1} parent=1 // pred_fallthru
      _
    // Predicated region
    $region22: #{tpu_custom_call.1} parent=1 // pred_check
      _
    $region23: #{tpu_custom_call.1} parent=1 // pred_check_branch
      %80 = sbr.rel (0) target = $region25
    $region24: #{tpu_custom_call.1} parent=1 // pred_region
      %s82 = ssub.s32 1024, 1024
      %83 = vsyncadd [#allocation12], %s82
      %s84 = sshll.u32 [#allocation11], 4
      %s85 = int_to_ptr.vmem [resolvable:$true] %s84
      %90 = dma.hbm_to_vmem [thread:$0]  %s5, 1024, %s85, [#allocation12], 64, 64, 4
    $region25: #{tpu_custom_call.1} parent=1 // pred_fallthru
      _
    // Predicated region
    $region26: #{tpu_custom_call.1} parent=1 // pred_check
      _
    $region27: #{tpu_custom_call.1} parent=1 // pred_check_branch
      %92 = sbr.rel (0) target = $region29
    $region28: #{tpu_custom_call.1} parent=1 // pred_region
      _
    $region29: #{tpu_custom_call.1} parent=1 // pred_fallthru
      _
    // Predicated region
    $region30: #{tpu_custom_call.1} parent=1 // pred_check
      _
    $region31: #{tpu_custom_call.1} parent=1 // pred_check_branch
      %94 = sbr.rel (0) target = $region33
    $region32: #{tpu_custom_call.1} parent=1 // pred_region
      %s96 = ssub.s32 2048, 2048
      %97 = vsyncadd [#allocation12], %s96
      %s98 = sshll.u32 [#allocation13], 4
      %s99 = int_to_ptr.vmem [resolvable:$true] %s98
      %104 = dma.hbm_to_vmem [thread:$0]  %s7, 2048, %s99, [#allocation12], 128, 128, 8
    $region33: #{tpu_custom_call.1} parent=1 // pred_fallthru
      _
    // Predicated region
    $region34: #{tpu_custom_call.1} parent=1 // pred_check
      _
    $region35: #{tpu_custom_call.1} parent=1 // pred_check_branch
      %106 = sbr.rel (0) target = $region37
    $region36: #{tpu_custom_call.1} parent=1 // pred_region
      _
    $region37: #{tpu_custom_call.1} parent=1 // pred_fallthru
      _
    // Predicated region
    $region38: #{tpu_custom_call.1} parent=1 // pred_check
      _
    $region39: #{tpu_custom_call.1} parent=1 // pred_check_branch
      %108 = sbr.rel (0) target = $region41
    $region40: #{tpu_custom_call.1} parent=1 // pred_region
      %109 = dma.done [#allocation3], 1024
    $region41: #{tpu_custom_call.1} parent=1 // pred_fallthru
      _
    // Predicated region
    $region42: #{tpu_custom_call.1} parent=1 // pred_check
      _
    $region43: #{tpu_custom_call.1} parent=1 // pred_check_branch
      %111 = sbr.rel (0) target = $region45
    $region44: #{tpu_custom_call.1} parent=1 // pred_region
      %112 = dma.done [#allocation6], 1024
    $region45: #{tpu_custom_call.1} parent=1 // pred_fallthru
      _
    // Predicated region
    $region46: #{tpu_custom_call.1} parent=1 // pred_check
      _
    $region47: #{tpu_custom_call.1} parent=1 // pred_check_branch
      %114 = sbr.rel (0) target = $region49
    $region48: #{tpu_custom_call.1} parent=1 // pred_region
      %115 = dma.done [#allocation6], 1024
    $region49: #{tpu_custom_call.1} parent=1 // pred_fallthru
      _
    // Predicated region
    $region50: #{tpu_custom_call.1} parent=1 // pred_check
      _
    $region51: #{tpu_custom_call.1} parent=1 // pred_check_branch
      %117 = sbr.rel (0) target = $region53
    $region52: #{tpu_custom_call.1} parent=1 // pred_region
      %118 = dma.done [#allocation9], 1024
    $region53: #{tpu_custom_call.1} parent=1 // pred_fallthru
      _
    // Predicated region
    $region54: #{tpu_custom_call.1} parent=1 // pred_check
      _
    $region55: #{tpu_custom_call.1} parent=1 // pred_check_branch
      %120 = sbr.rel (0) target = $region57
    $region56: #{tpu_custom_call.1} parent=1 // pred_region
      %121 = dma.done [#allocation9], 1024
    $region57: #{tpu_custom_call.1} parent=1 // pred_fallthru
      _
    // Predicated region
    $region58: #{tpu_custom_call.1} parent=1 // pred_check
      _
    $region59: #{tpu_custom_call.1} parent=1 // pred_check_branch
      %123 = sbr.rel (0) target = $region61
    $region60: #{tpu_custom_call.1} parent=1 // pred_region
      %124 = dma.done [#allocation12], 1024
    $region61: #{tpu_custom_call.1} parent=1 // pred_fallthru
      _
    // Predicated region
    $region62: #{tpu_custom_call.1} parent=1 // pred_check
      _
    $region63: #{tpu_custom_call.1} parent=1 // pred_check_branch
      %126 = sbr.rel (0) target = $region65
    $region64: #{tpu_custom_call.1} parent=1 // pred_region
      %127 = dma.done [#allocation12], 2048
    $region65: #{tpu_custom_call.1} parent=1 // pred_fallthru
      _
    %v129 = vld [vmem:[#allocation2] sm:$0xf]
    %v130 = vld [vmem:[#allocation2 + $0x4] sm:$0xf]
    %v131 = vld [vmem:[#allocation2 + $0x8] sm:$0xf]
    %v132 = vld [vmem:[#allocation2 + $0xc] sm:$0xf]
    %v133 = vld [vmem:[#allocation2 + $0x10] sm:$0xf]
    %v134 = vld [vmem:[#allocation2 + $0x14] sm:$0xf]
    %v135 = vld [vmem:[#allocation2 + $0x18] sm:$0xf]
    %v136 = vld [vmem:[#allocation2 + $0x1c] sm:$0xf]
    %v137 = vld [vmem:[#allocation2 + $0x20] sm:$0xf]
    %v138 = vld [vmem:[#allocation2 + $0x24] sm:$0xf]
    %v139 = vld [vmem:[#allocation2 + $0x28] sm:$0xf]
    %v140 = vld [vmem:[#allocation2 + $0x2c] sm:$0xf]
    %v141 = vld [vmem:[#allocation2 + $0x30] sm:$0xf]
    %v142 = vld [vmem:[#allocation2 + $0x34] sm:$0xf]
    %v143 = vld [vmem:[#allocation2 + $0x38] sm:$0xf]
    %v144 = vld [vmem:[#allocation2 + $0x3c] sm:$0xf]
    %v145 = vld [vmem:[#allocation8] sm:$0xf]
    %v146 = vld [vmem:[#allocation8 + $0x4] sm:$0xf]
    %v147 = vld [vmem:[#allocation8 + $0x8] sm:$0xf]
    %v148 = vld [vmem:[#allocation8 + $0xc] sm:$0xf]
    %v149 = vld [vmem:[#allocation8 + $0x10] sm:$0xf]
    %v150 = vld [vmem:[#allocation8 + $0x14] sm:$0xf]
    %v151 = vld [vmem:[#allocation8 + $0x18] sm:$0xf]
    %v152 = vld [vmem:[#allocation8 + $0x1c] sm:$0xf]
    %v153 = vld [vmem:[#allocation8 + $0x20] sm:$0xf]
    %v154 = vld [vmem:[#allocation8 + $0x24] sm:$0xf]
    %v155 = vld [vmem:[#allocation8 + $0x28] sm:$0xf]
    %v156 = vld [vmem:[#allocation8 + $0x2c] sm:$0xf]
    %v157 = vld [vmem:[#allocation8 + $0x30] sm:$0xf]
    %v158 = vld [vmem:[#allocation8 + $0x34] sm:$0xf]
    %v159 = vld [vmem:[#allocation8 + $0x38] sm:$0xf]
    %v160 = vld [vmem:[#allocation8 + $0x3c] sm:$0xf]
    %v161 = vld [vmem:[#allocation5] sm:$0xf]
    %v162 = vld [vmem:[#allocation5 + $0x4] sm:$0xf]
    %v163 = vld [vmem:[#allocation5 + $0x8] sm:$0xf]
    %v164 = vld [vmem:[#allocation5 + $0xc] sm:$0xf]
    %v165 = vld [vmem:[#allocation5 + $0x10] sm:$0xf]
    %v166 = vld [vmem:[#allocation5 + $0x14] sm:$0xf]
    %v167 = vld [vmem:[#allocation5 + $0x18] sm:$0xf]
    %v168 = vld [vmem:[#allocation5 + $0x1c] sm:$0xf]
    %v169 = vld [vmem:[#allocation5 + $0x20] sm:$0xf]
    %v170 = vld [vmem:[#allocation5 + $0x24] sm:$0xf]
    %v171 = vld [vmem:[#allocation5 + $0x28] sm:$0xf]
    %v172 = vld [vmem:[#allocation5 + $0x2c] sm:$0xf]
    %v173 = vld [vmem:[#allocation5 + $0x30] sm:$0xf]
    %v174 = vld [vmem:[#allocation5 + $0x34] sm:$0xf]
    %v175 = vld [vmem:[#allocation5 + $0x38] sm:$0xf]
    %v176 = vld [vmem:[#allocation5 + $0x3c] sm:$0xf]
    %v177 = vld [vmem:[#allocation10] sm:$0xf]
    %v178 = vld [vmem:[#allocation10 + $0x4] sm:$0xf]
    %v179 = vld [vmem:[#allocation10 + $0x8] sm:$0xf]
    %v180 = vld [vmem:[#allocation10 + $0xc] sm:$0xf]
    %v181 = vld [vmem:[#allocation10 + $0x10] sm:$0xf]
    %v182 = vld [vmem:[#allocation10 + $0x14] sm:$0xf]
    %v183 = vld [vmem:[#allocation10 + $0x18] sm:$0xf]
    %v184 = vld [vmem:[#allocation10 + $0x1c] sm:$0xf]
    %v185 = vld [vmem:[#allocation10 + $0x20] sm:$0xf]
    %v186 = vld [vmem:[#allocation10 + $0x24] sm:$0xf]
    %v187 = vld [vmem:[#allocation10 + $0x28] sm:$0xf]
    %v188 = vld [vmem:[#allocation10 + $0x2c] sm:$0xf]
    %v189 = vld [vmem:[#allocation10 + $0x30] sm:$0xf]
    %v190 = vld [vmem:[#allocation10 + $0x34] sm:$0xf]
    %v191 = vld [vmem:[#allocation10 + $0x38] sm:$0xf]
    %v192 = vld [vmem:[#allocation10 + $0x3c] sm:$0xf]
    %v209 = vunpack.c.l.b16 %v161
    %v210 = vunpack.c.l.b16 %v162
    %v211 = vunpack.c.l.b16 %v163
    %v212 = vunpack.c.l.b16 %v164
    %v213 = vunpack.c.l.b16 %v165
    %v214 = vunpack.c.l.b16 %v166
    %v215 = vunpack.c.l.b16 %v167
    %v216 = vunpack.c.l.b16 %v168
    %v217 = vunpack.c.l.b16 %v169
    %v218 = vunpack.c.l.b16 %v170
    %v219 = vunpack.c.l.b16 %v171
    %v220 = vunpack.c.l.b16 %v172
    %v221 = vunpack.c.l.b16 %v173
    %v222 = vunpack.c.l.b16 %v174
    %v223 = vunpack.c.l.b16 %v175
    %v224 = vunpack.c.l.b16 %v176
    %v225 = vpack.c.b16 %v210, %v209
    %v226 = vpack.c.b16 %v212, %v211
    %v227 = vpack.c.b16 %v214, %v213
    %v228 = vpack.c.b16 %v216, %v215
    %v229 = vpack.c.b16 %v218, %v217
    %v230 = vpack.c.b16 %v220, %v219
    %v231 = vpack.c.b16 %v222, %v221
    %v232 = vpack.c.b16 %v224, %v223
    %v257 = vunpack.c.l.b16 %v177
    %v258 = vunpack.c.l.b16 %v178
    %v259 = vunpack.c.l.b16 %v179
    %v260 = vunpack.c.l.b16 %v180
    %v261 = vunpack.c.l.b16 %v181
    %v262 = vunpack.c.l.b16 %v182
    %v263 = vunpack.c.l.b16 %v183
    %v264 = vunpack.c.l.b16 %v184
    %v265 = vunpack.c.l.b16 %v185
    %v266 = vunpack.c.l.b16 %v186
    %v267 = vunpack.c.l.b16 %v187
    %v268 = vunpack.c.l.b16 %v188
    %v269 = vunpack.c.l.b16 %v189
    %v270 = vunpack.c.l.b16 %v190
    %v271 = vunpack.c.l.b16 %v191
    %v272 = vunpack.c.l.b16 %v192
    %v273 = vpack.c.b16 %v258, %v257
    %v274 = vpack.c.b16 %v260, %v259
    %v275 = vpack.c.b16 %v262, %v261
    %v276 = vpack.c.b16 %v264, %v263
    %v277 = vpack.c.b16 %v266, %v265
    %v278 = vpack.c.b16 %v268, %v267
    %v279 = vpack.c.b16 %v270, %v269
    %v280 = vpack.c.b16 %v272, %v271
    %289 = vmatprep.subr.bf16.mxu0 0
    %290 = vmatpush1.bf16.msra.mxu0 %v280
    %291 = vmatprep.subr.bf16.mxu0 0
    %292 = vmatpush1.bf16.msra.mxu0 %v279
    %293 = vmatprep.subr.bf16.mxu0 0
    %294 = vmatpush1.bf16.msra.mxu0 %v278
    %295 = vmatprep.subr.bf16.mxu0 0
    %296 = vmatpush1.bf16.msra.mxu0 %v277
    %297 = vmatprep.subr.bf16.mxu0 0
    %298 = vmatpush1.bf16.msra.mxu0 %v276
    %299 = vmatprep.subr.bf16.mxu0 0
    %300 = vmatpush1.bf16.msra.mxu0 %v275
    %301 = vmatprep.subr.bf16.mxu0 0
    %302 = vmatpush1.bf16.msra.mxu0 %v274
    %303 = vmatprep.subr.bf16.mxu0 0
    %304 = vmatpush1.bf16.msra.mxu0 %v273
    %305 = vmatprep.subr.bf16.mxu0 0
    %306 = vmatpush2.bf16.msra.mxu0 0
    %307 = vmatprep.subr.bf16.mxu0 0
    %308 = vmatpush2.bf16.msra.mxu0 0
    %309 = vmatprep.subr.bf16.mxu0 0
    %310 = vmatpush2.bf16.msra.mxu0 0
    %311 = vmatprep.subr.bf16.mxu0 0
    %312 = vmatpush2.bf16.msra.mxu0 0
    %313 = vmatprep.subr.bf16.mxu0 0
    %314 = vmatpush2.bf16.msra.mxu0 0
    %315 = vmatprep.subr.bf16.mxu0 0
    %316 = vmatpush2.bf16.msra.mxu0 0
    %317 = vmatprep.subr.bf16.mxu0 0
    %318 = vmatpush2.bf16.msra.mxu0 0
    %319 = vmatprep.subr.bf16.mxu0 0
    %320 = vmatpush2.bf16.msra.mxu0 0
    %321 = vmatprep.mubr.bf16.mxu0 0
    %322 = vmatmul.mubr.bf16.gmra.mxu0 %v225
    %v323 = vpop.f32.mrf.mxu0
    %v324 = vadd.f32 0.0, %v323
    %v325 = vpop.f32.mrf.mxu0
    %v326 = vpop.f32.mrf.mxu0
    %v327 = vadd.f32 0.0, %v326
    %v328 = vpop.f32.mrf.mxu0
    %329 = vmatprep.mubr.bf16.mxu0 0
    %330 = vmatmul.mubr.bf16.gmra.mxu0 %v226
    %v331 = vpop.f32.mrf.mxu0
    %v332 = vadd.f32 0.0, %v331
    %v333 = vpop.f32.mrf.mxu0
    %v334 = vpop.f32.mrf.mxu0
    %v335 = vadd.f32 0.0, %v334
    %v336 = vpop.f32.mrf.mxu0
    %337 = vmatprep.mubr.bf16.mxu0 0
    %338 = vmatmul.mubr.bf16.gmra.mxu0 %v227
    %v339 = vpop.f32.mrf.mxu0
    %v340 = vadd.f32 0.0, %v339
    %v341 = vpop.f32.mrf.mxu0
    %v342 = vpop.f32.mrf.mxu0
    %v343 = vadd.f32 0.0, %v342
    %v344 = vpop.f32.mrf.mxu0
    %345 = vmatprep.mubr.bf16.mxu0 0
    %346 = vmatmul.mubr.bf16.gmra.mxu0 %v228
    %v347 = vpop.f32.mrf.mxu0
    %v348 = vadd.f32 0.0, %v347
    %v349 = vpop.f32.mrf.mxu0
    %v350 = vpop.f32.mrf.mxu0
    %v351 = vadd.f32 0.0, %v350
    %v352 = vpop.f32.mrf.mxu0
    %353 = vmatprep.mubr.bf16.mxu0 0
    %354 = vmatmul.mubr.bf16.gmra.mxu0 %v229
    %v355 = vpop.f32.mrf.mxu0
    %v356 = vadd.f32 0.0, %v355
    %v357 = vpop.f32.mrf.mxu0
    %v358 = vpop.f32.mrf.mxu0
    %v359 = vadd.f32 0.0, %v358
    %v360 = vpop.f32.mrf.mxu0
    %361 = vmatprep.mubr.bf16.mxu0 0
    %362 = vmatmul.mubr.bf16.gmra.mxu0 %v230
    %v363 = vpop.f32.mrf.mxu0
    %v364 = vadd.f32 0.0, %v363
    %v365 = vpop.f32.mrf.mxu0
    %v366 = vpop.f32.mrf.mxu0
    %v367 = vadd.f32 0.0, %v366
    %v368 = vpop.f32.mrf.mxu0
    %369 = vmatprep.mubr.bf16.mxu0 0
    %370 = vmatmul.mubr.bf16.gmra.mxu0 %v231
    %v371 = vpop.f32.mrf.mxu0
    %v372 = vadd.f32 0.0, %v371
    %v373 = vpop.f32.mrf.mxu0
    %v374 = vpop.f32.mrf.mxu0
    %v375 = vadd.f32 0.0, %v374
    %v376 = vpop.f32.mrf.mxu0
    %377 = vmatprep.mubr.bf16.mxu0 0
    %378 = vmatmul.mubr.bf16.gmra.mxu0 %v232
    %v379 = vpop.f32.mrf.mxu0
    %v380 = vadd.f32 0.0, %v379
    %v381 = vpop.f32.mrf.mxu0
    %v382 = vpop.f32.mrf.mxu0
    %v383 = vadd.f32 0.0, %v382
    %v384 = vpop.f32.mrf.mxu0
    %385 = vdwg.mxu0
    %v402 = vunpack.c.l.b16 %v129
    %v403 = vunpack.c.l.b16 %v130
    %v404 = vunpack.c.l.b16 %v131
    %v405 = vunpack.c.l.b16 %v132
    %v406 = vunpack.c.l.b16 %v133
    %v407 = vunpack.c.l.b16 %v134
    %v408 = vunpack.c.l.b16 %v135
    %v409 = vunpack.c.l.b16 %v136
    %v410 = vunpack.c.l.b16 %v137
    %v411 = vunpack.c.l.b16 %v138
    %v412 = vunpack.c.l.b16 %v139
    %v413 = vunpack.c.l.b16 %v140
    %v414 = vunpack.c.l.b16 %v141
    %v415 = vunpack.c.l.b16 %v142
    %v416 = vunpack.c.l.b16 %v143
    %v417 = vunpack.c.l.b16 %v144
    %v418 = vpack.c.b16 %v403, %v402
    %v419 = vpack.c.b16 %v405, %v404
    %v420 = vpack.c.b16 %v407, %v406
    %v421 = vpack.c.b16 %v409, %v408
    %v422 = vpack.c.b16 %v411, %v410
    %v423 = vpack.c.b16 %v413, %v412
    %v424 = vpack.c.b16 %v415, %v414
    %v425 = vpack.c.b16 %v417, %v416
    %v450 = vunpack.c.l.b16 %v145
    %v451 = vunpack.c.l.b16 %v146
    %v452 = vunpack.c.l.b16 %v147
    %v453 = vunpack.c.l.b16 %v148
    %v454 = vunpack.c.l.b16 %v149
    %v455 = vunpack.c.l.b16 %v150
    %v456 = vunpack.c.l.b16 %v151
    %v457 = vunpack.c.l.b16 %v152
    %v458 = vunpack.c.l.b16 %v153
    %v459 = vunpack.c.l.b16 %v154
    %v460 = vunpack.c.l.b16 %v155
    %v461 = vunpack.c.l.b16 %v156
    %v462 = vunpack.c.l.b16 %v157
    %v463 = vunpack.c.l.b16 %v158
    %v464 = vunpack.c.l.b16 %v159
    %v465 = vunpack.c.l.b16 %v160
    %v466 = vpack.c.b16 %v451, %v450
    %v467 = vpack.c.b16 %v453, %v452
    %v468 = vpack.c.b16 %v455, %v454
    %v469 = vpack.c.b16 %v457, %v456
    %v470 = vpack.c.b16 %v459, %v458
    %v471 = vpack.c.b16 %v461, %v460
    %v472 = vpack.c.b16 %v463, %v462
    %v473 = vpack.c.b16 %v465, %v464
    %482 = vmatprep.subr.bf16.mxu0 0
    %483 = vmatpush1.bf16.msra.mxu0 %v473
    %484 = vmatprep.subr.bf16.mxu0 0
    %485 = vmatpush1.bf16.msra.mxu0 %v472
    %486 = vmatprep.subr.bf16.mxu0 0
    %487 = vmatpush1.bf16.msra.mxu0 %v471
    %488 = vmatprep.subr.bf16.mxu0 0
    %489 = vmatpush1.bf16.msra.mxu0 %v470
    %490 = vmatprep.subr.bf16.mxu0 0
    %491 = vmatpush1.bf16.msra.mxu0 %v469
    %492 = vmatprep.subr.bf16.mxu0 0
    %493 = vmatpush1.bf16.msra.mxu0 %v468
    %494 = vmatprep.subr.bf16.mxu0 0
    %495 = vmatpush1.bf16.msra.mxu0 %v467
    %496 = vmatprep.subr.bf16.mxu0 0
    %497 = vmatpush1.bf16.msra.mxu0 %v466
    %498 = vmatprep.subr.bf16.mxu0 0
    %499 = vmatpush2.bf16.msra.mxu0 0
    %500 = vmatprep.subr.bf16.mxu0 0
    %501 = vmatpush2.bf16.msra.mxu0 0
    %502 = vmatprep.subr.bf16.mxu0 0
    %503 = vmatpush2.bf16.msra.mxu0 0
    %504 = vmatprep.subr.bf16.mxu0 0
    %505 = vmatpush2.bf16.msra.mxu0 0
    %506 = vmatprep.subr.bf16.mxu0 0
    %507 = vmatpush2.bf16.msra.mxu0 0
    %508 = vmatprep.subr.bf16.mxu0 0
    %509 = vmatpush2.bf16.msra.mxu0 0
    %510 = vmatprep.subr.bf16.mxu0 0
    %511 = vmatpush2.bf16.msra.mxu0 0
    %512 = vmatprep.subr.bf16.mxu0 0
    %513 = vmatpush2.bf16.msra.mxu0 0
    %514 = vmatprep.mubr.bf16.mxu0 0
    %515 = vmatmul.mubr.bf16.gmra.mxu0 %v418
    %v516 = vpop.f32.mrf.mxu0
    %v517 = vadd.f32 %v324, %v516
    %v518 = vpop.f32.mrf.mxu0
    %v519 = vpop.f32.mrf.mxu0
    %v520 = vadd.f32 %v327, %v519
    %v521 = vpop.f32.mrf.mxu0
    %522 = vmatprep.mubr.bf16.mxu0 0
    %523 = vmatmul.mubr.bf16.gmra.mxu0 %v419
    %v524 = vpop.f32.mrf.mxu0
    %v525 = vadd.f32 %v332, %v524
    %v526 = vpop.f32.mrf.mxu0
    %v527 = vpop.f32.mrf.mxu0
    %v528 = vadd.f32 %v335, %v527
    %v529 = vpop.f32.mrf.mxu0
    %530 = vmatprep.mubr.bf16.mxu0 0
    %531 = vmatmul.mubr.bf16.gmra.mxu0 %v420
    %v532 = vpop.f32.mrf.mxu0
    %v533 = vadd.f32 %v340, %v532
    %v534 = vpop.f32.mrf.mxu0
    %v535 = vpop.f32.mrf.mxu0
    %v536 = vadd.f32 %v343, %v535
    %v537 = vpop.f32.mrf.mxu0
    %538 = vmatprep.mubr.bf16.mxu0 0
    %539 = vmatmul.mubr.bf16.gmra.mxu0 %v421
    %v540 = vpop.f32.mrf.mxu0
    %v541 = vadd.f32 %v348, %v540
    %v542 = vpop.f32.mrf.mxu0
    %v543 = vpop.f32.mrf.mxu0
    %v544 = vadd.f32 %v351, %v543
    %v545 = vpop.f32.mrf.mxu0
    %546 = vmatprep.mubr.bf16.mxu0 0
    %547 = vmatmul.mubr.bf16.gmra.mxu0 %v422
    %v548 = vpop.f32.mrf.mxu0
    %v549 = vadd.f32 %v356, %v548
    %v550 = vpop.f32.mrf.mxu0
    %v551 = vpop.f32.mrf.mxu0
    %v552 = vadd.f32 %v359, %v551
    %v553 = vpop.f32.mrf.mxu0
    %554 = vmatprep.mubr.bf16.mxu0 0
    %555 = vmatmul.mubr.bf16.gmra.mxu0 %v423
    %v556 = vpop.f32.mrf.mxu0
    %v557 = vadd.f32 %v364, %v556
    %v558 = vpop.f32.mrf.mxu0
    %v559 = vpop.f32.mrf.mxu0
    %v560 = vadd.f32 %v367, %v559
    %v561 = vpop.f32.mrf.mxu0
    %562 = vmatprep.mubr.bf16.mxu0 0
    %563 = vmatmul.mubr.bf16.gmra.mxu0 %v424
    %v564 = vpop.f32.mrf.mxu0
    %v565 = vadd.f32 %v372, %v564
    %v566 = vpop.f32.mrf.mxu0
    %v567 = vpop.f32.mrf.mxu0
    %v568 = vadd.f32 %v375, %v567
    %v569 = vpop.f32.mrf.mxu0
    %570 = vmatprep.mubr.bf16.mxu0 0
    %571 = vmatmul.mubr.bf16.gmra.mxu0 %v425
    %v572 = vpop.f32.mrf.mxu0
    %v573 = vadd.f32 %v380, %v572
    %v574 = vpop.f32.mrf.mxu0
    %v575 = vpop.f32.mrf.mxu0
    %v576 = vadd.f32 %v383, %v575
    %v577 = vpop.f32.mrf.mxu0
    %578 = vdwg.mxu0
    %v579 = vld [vmem:[#allocation7] sm:$0xf]
    %v580 = vld [vmem:[#allocation7 + $0x4] sm:$0xf]
    %v581 = vld [vmem:[#allocation7 + $0x8] sm:$0xf]
    %v582 = vld [vmem:[#allocation7 + $0xc] sm:$0xf]
    %v583 = vld [vmem:[#allocation7 + $0x10] sm:$0xf]
    %v584 = vld [vmem:[#allocation7 + $0x14] sm:$0xf]
    %v585 = vld [vmem:[#allocation7 + $0x18] sm:$0xf]
    %v586 = vld [vmem:[#allocation7 + $0x1c] sm:$0xf]
    %v587 = vld [vmem:[#allocation7 + $0x20] sm:$0xf]
    %v588 = vld [vmem:[#allocation7 + $0x24] sm:$0xf]
    %v589 = vld [vmem:[#allocation7 + $0x28] sm:$0xf]
    %v590 = vld [vmem:[#allocation7 + $0x2c] sm:$0xf]
    %v591 = vld [vmem:[#allocation7 + $0x30] sm:$0xf]
    %v592 = vld [vmem:[#allocation7 + $0x34] sm:$0xf]
    %v593 = vld [vmem:[#allocation7 + $0x38] sm:$0xf]
    %v594 = vld [vmem:[#allocation7 + $0x3c] sm:$0xf]
    %v595 = vld [vmem:[#allocation11] sm:$0xf]
    %v596 = vld [vmem:[#allocation11 + $0x4] sm:$0xf]
    %v597 = vld [vmem:[#allocation11 + $0x8] sm:$0xf]
    %v598 = vld [vmem:[#allocation11 + $0xc] sm:$0xf]
    %v599 = vld [vmem:[#allocation11 + $0x10] sm:$0xf]
    %v600 = vld [vmem:[#allocation11 + $0x14] sm:$0xf]
    %v601 = vld [vmem:[#allocation11 + $0x18] sm:$0xf]
    %v602 = vld [vmem:[#allocation11 + $0x1c] sm:$0xf]
    %v603 = vld [vmem:[#allocation11 + $0x20] sm:$0xf]
    %v604 = vld [vmem:[#allocation11 + $0x24] sm:$0xf]
    %v605 = vld [vmem:[#allocation11 + $0x28] sm:$0xf]
    %v606 = vld [vmem:[#allocation11 + $0x2c] sm:$0xf]
    %v607 = vld [vmem:[#allocation11 + $0x30] sm:$0xf]
    %v608 = vld [vmem:[#allocation11 + $0x34] sm:$0xf]
    %v609 = vld [vmem:[#allocation11 + $0x38] sm:$0xf]
    %v610 = vld [vmem:[#allocation11 + $0x3c] sm:$0xf]
    %v627 = vunpack.c.l.b16 %v579
    %v628 = vunpack.c.l.b16 %v580
    %v629 = vunpack.c.l.b16 %v581
    %v630 = vunpack.c.l.b16 %v582
    %v631 = vunpack.c.l.b16 %v583
    %v632 = vunpack.c.l.b16 %v584
    %v633 = vunpack.c.l.b16 %v585
    %v634 = vunpack.c.l.b16 %v586
    %v635 = vunpack.c.l.b16 %v587
    %v636 = vunpack.c.l.b16 %v588
    %v637 = vunpack.c.l.b16 %v589
    %v638 = vunpack.c.l.b16 %v590
    %v639 = vunpack.c.l.b16 %v591
    %v640 = vunpack.c.l.b16 %v592
    %v641 = vunpack.c.l.b16 %v593
    %v642 = vunpack.c.l.b16 %v594
    %v643 = vpack.c.b16 %v628, %v627
    %v644 = vpack.c.b16 %v630, %v629
    %v645 = vpack.c.b16 %v632, %v631
    %v646 = vpack.c.b16 %v634, %v633
    %v647 = vpack.c.b16 %v636, %v635
    %v648 = vpack.c.b16 %v638, %v637
    %v649 = vpack.c.b16 %v640, %v639
    %v650 = vpack.c.b16 %v642, %v641
    %v675 = vunpack.c.l.b16 %v595
    %v676 = vunpack.c.l.b16 %v596
    %v677 = vunpack.c.l.b16 %v597
    %v678 = vunpack.c.l.b16 %v598
    %v679 = vunpack.c.l.b16 %v599
    %v680 = vunpack.c.l.b16 %v600
    %v681 = vunpack.c.l.b16 %v601
    %v682 = vunpack.c.l.b16 %v602
    %v683 = vunpack.c.l.b16 %v603
    %v684 = vunpack.c.l.b16 %v604
    %v685 = vunpack.c.l.b16 %v605
    %v686 = vunpack.c.l.b16 %v606
    %v687 = vunpack.c.l.b16 %v607
    %v688 = vunpack.c.l.b16 %v608
    %v689 = vunpack.c.l.b16 %v609
    %v690 = vunpack.c.l.b16 %v610
    %v691 = vpack.c.b16 %v676, %v675
    %v692 = vpack.c.b16 %v678, %v677
    %v693 = vpack.c.b16 %v680, %v679
    %v694 = vpack.c.b16 %v682, %v681
    %v695 = vpack.c.b16 %v684, %v683
    %v696 = vpack.c.b16 %v686, %v685
    %v697 = vpack.c.b16 %v688, %v687
    %v698 = vpack.c.b16 %v690, %v689
    %707 = vmatprep.subr.bf16.mxu0 0
    %708 = vmatpush1.bf16.msra.mxu0 %v698
    %709 = vmatprep.subr.bf16.mxu0 0
    %710 = vmatpush1.bf16.msra.mxu0 %v697
    %711 = vmatprep.subr.bf16.mxu0 0
    %712 = vmatpush1.bf16.msra.mxu0 %v696
    %713 = vmatprep.subr.bf16.mxu0 0
    %714 = vmatpush1.bf16.msra.mxu0 %v695
    %715 = vmatprep.subr.bf16.mxu0 0
    %716 = vmatpush1.bf16.msra.mxu0 %v694
    %717 = vmatprep.subr.bf16.mxu0 0
    %718 = vmatpush1.bf16.msra.mxu0 %v693
    %719 = vmatprep.subr.bf16.mxu0 0
    %720 = vmatpush1.bf16.msra.mxu0 %v692
    %721 = vmatprep.subr.bf16.mxu0 0
    %722 = vmatpush1.bf16.msra.mxu0 %v691
    %723 = vmatprep.subr.bf16.mxu0 0
    %724 = vmatpush2.bf16.msra.mxu0 0
    %725 = vmatprep.subr.bf16.mxu0 0
    %726 = vmatpush2.bf16.msra.mxu0 0
    %727 = vmatprep.subr.bf16.mxu0 0
    %728 = vmatpush2.bf16.msra.mxu0 0
    %729 = vmatprep.subr.bf16.mxu0 0
    %730 = vmatpush2.bf16.msra.mxu0 0
    %731 = vmatprep.subr.bf16.mxu0 0
    %732 = vmatpush2.bf16.msra.mxu0 0
    %733 = vmatprep.subr.bf16.mxu0 0
    %734 = vmatpush2.bf16.msra.mxu0 0
    %735 = vmatprep.subr.bf16.mxu0 0
    %736 = vmatpush2.bf16.msra.mxu0 0
    %737 = vmatprep.subr.bf16.mxu0 0
    %738 = vmatpush2.bf16.msra.mxu0 0
    %739 = vmatprep.mubr.bf16.mxu0 0
    %740 = vmatmul.mubr.bf16.gmra.mxu0 %v643
    %v741 = vpop.f32.mrf.mxu0
    %v742 = vadd.f32 0.0, %v741
    %v743 = vpop.f32.mrf.mxu0
    %v744 = vpop.f32.mrf.mxu0
    %v745 = vadd.f32 0.0, %v744
    %v746 = vpop.f32.mrf.mxu0
    %747 = vmatprep.mubr.bf16.mxu0 0
    %748 = vmatmul.mubr.bf16.gmra.mxu0 %v644
    %v749 = vpop.f32.mrf.mxu0
    %v750 = vadd.f32 0.0, %v749
    %v751 = vpop.f32.mrf.mxu0
    %v752 = vpop.f32.mrf.mxu0
    %v753 = vadd.f32 0.0, %v752
    %v754 = vpop.f32.mrf.mxu0
    %755 = vmatprep.mubr.bf16.mxu0 0
    %756 = vmatmul.mubr.bf16.gmra.mxu0 %v645
    %v757 = vpop.f32.mrf.mxu0
    %v758 = vadd.f32 0.0, %v757
    %v759 = vpop.f32.mrf.mxu0
    %v760 = vpop.f32.mrf.mxu0
    %v761 = vadd.f32 0.0, %v760
    %v762 = vpop.f32.mrf.mxu0
    %763 = vmatprep.mubr.bf16.mxu0 0
    %764 = vmatmul.mubr.bf16.gmra.mxu0 %v646
    %v765 = vpop.f32.mrf.mxu0
    %v766 = vadd.f32 0.0, %v765
    %v767 = vpop.f32.mrf.mxu0
    %v768 = vpop.f32.mrf.mxu0
    %v769 = vadd.f32 0.0, %v768
    %v770 = vpop.f32.mrf.mxu0
    %771 = vmatprep.mubr.bf16.mxu0 0
    %772 = vmatmul.mubr.bf16.gmra.mxu0 %v647
    %v773 = vpop.f32.mrf.mxu0
    %v774 = vadd.f32 0.0, %v773
    %v775 = vpop.f32.mrf.mxu0
    %v776 = vpop.f32.mrf.mxu0
    %v777 = vadd.f32 0.0, %v776
    %v778 = vpop.f32.mrf.mxu0
    %779 = vmatprep.mubr.bf16.mxu0 0
    %780 = vmatmul.mubr.bf16.gmra.mxu0 %v648
    %v781 = vpop.f32.mrf.mxu0
    %v782 = vadd.f32 0.0, %v781
    %v783 = vpop.f32.mrf.mxu0
    %v784 = vpop.f32.mrf.mxu0
    %v785 = vadd.f32 0.0, %v784
    %v786 = vpop.f32.mrf.mxu0
    %787 = vmatprep.mubr.bf16.mxu0 0
    %788 = vmatmul.mubr.bf16.gmra.mxu0 %v649
    %v789 = vpop.f32.mrf.mxu0
    %v790 = vadd.f32 0.0, %v789
    %v791 = vpop.f32.mrf.mxu0
    %v792 = vpop.f32.mrf.mxu0
    %v793 = vadd.f32 0.0, %v792
    %v794 = vpop.f32.mrf.mxu0
    %795 = vmatprep.mubr.bf16.mxu0 0
    %796 = vmatmul.mubr.bf16.gmra.mxu0 %v650
    %v797 = vpop.f32.mrf.mxu0
    %v798 = vadd.f32 0.0, %v797
    %v799 = vpop.f32.mrf.mxu0
    %v800 = vpop.f32.mrf.mxu0
    %v801 = vadd.f32 0.0, %v800
    %v802 = vpop.f32.mrf.mxu0
    %803 = vdwg.mxu0
    %v804 = vadd.f32 %v517, %v742
    %v805 = vadd.f32 %v520, %v745
    %v806 = vadd.f32 %v525, %v750
    %v807 = vadd.f32 %v528, %v753
    %v808 = vadd.f32 %v533, %v758
    %v809 = vadd.f32 %v536, %v761
    %v810 = vadd.f32 %v541, %v766
    %v811 = vadd.f32 %v544, %v769
    %v812 = vadd.f32 %v549, %v774
    %v813 = vadd.f32 %v552, %v777
    %v814 = vadd.f32 %v557, %v782
    %v815 = vadd.f32 %v560, %v785
    %v816 = vadd.f32 %v565, %v790
    %v817 = vadd.f32 %v568, %v793
    %v818 = vadd.f32 %v573, %v798
    %v819 = vadd.f32 %v576, %v801
    %v820 = vld [vmem:[%s6] sm:$0x1]
    %v822 = vlaneseq
    %v823 = vshrl.u32 %v822, 7
    %v824 = vsub.s32 0, %v823
    %v825 = vrot.slane %v820, %v824
    %v827 = vadd.f32 %v804, %v825
    %v828 = vadd.f32 %v805, %v825
    %v829 = vadd.f32 %v806, %v825
    %v830 = vadd.f32 %v807, %v825
    %v831 = vadd.f32 %v808, %v825
    %v832 = vadd.f32 %v809, %v825
    %v833 = vadd.f32 %v810, %v825
    %v834 = vadd.f32 %v811, %v825
    %v835 = vadd.f32 %v812, %v825
    %v836 = vadd.f32 %v813, %v825
    %v837 = vadd.f32 %v814, %v825
    %v838 = vadd.f32 %v815, %v825
    %v839 = vadd.f32 %v816, %v825
    %v840 = vadd.f32 %v817, %v825
    %v841 = vadd.f32 %v818, %v825
    %v842 = vadd.f32 %v819, %v825
    %v843 = vmax.f32 %v827, 0.0
    %v844 = vmax.f32 %v828, 0.0
    %v845 = vmax.f32 %v829, 0.0
    %v846 = vmax.f32 %v830, 0.0
    %v847 = vmax.f32 %v831, 0.0
    %v848 = vmax.f32 %v832, 0.0
    %v849 = vmax.f32 %v833, 0.0
    %v850 = vmax.f32 %v834, 0.0
    %v851 = vmax.f32 %v835, 0.0
    %v852 = vmax.f32 %v836, 0.0
    %v853 = vmax.f32 %v837, 0.0
    %v854 = vmax.f32 %v838, 0.0
    %v855 = vmax.f32 %v839, 0.0
    %v856 = vmax.f32 %v840, 0.0
    %v857 = vmax.f32 %v841, 0.0
    %v858 = vmax.f32 %v842, 0.0
    %v859 = vpack.c.bf16 %v844, %v843
    %v860 = vpack.c.bf16 %v846, %v845
    %v861 = vpack.c.bf16 %v848, %v847
    %v862 = vpack.c.bf16 %v850, %v849
    %v863 = vpack.c.bf16 %v852, %v851
    %v864 = vpack.c.bf16 %v854, %v853
    %v865 = vpack.c.bf16 %v856, %v855
    %v866 = vpack.c.bf16 %v858, %v857
    %v867 = vld [vmem:[#allocation13] sm:$0xff]
    %v868 = vld [vmem:[#allocation13 + $0x8] sm:$0xff]
    %v869 = vld [vmem:[#allocation13 + $0x10] sm:$0xff]
    %v870 = vld [vmem:[#allocation13 + $0x18] sm:$0xff]
    %v871 = vld [vmem:[#allocation13 + $0x20] sm:$0xff]
    %v872 = vld [vmem:[#allocation13 + $0x28] sm:$0xff]
    %v873 = vld [vmem:[#allocation13 + $0x30] sm:$0xff]
    %v874 = vld [vmem:[#allocation13 + $0x38] sm:$0xff]
    %v875 = vld [vmem:[#allocation13 + $0x40] sm:$0xff]
    %v876 = vld [vmem:[#allocation13 + $0x48] sm:$0xff]
    %v877 = vld [vmem:[#allocation13 + $0x50] sm:$0xff]
    %v878 = vld [vmem:[#allocation13 + $0x58] sm:$0xff]
    %v879 = vld [vmem:[#allocation13 + $0x60] sm:$0xff]
    %v880 = vld [vmem:[#allocation13 + $0x68] sm:$0xff]
    %v881 = vld [vmem:[#allocation13 + $0x70] sm:$0xff]
    %v882 = vld [vmem:[#allocation13 + $0x78] sm:$0xff]
    %v883 = vld [vmem:[%s8] sm:$0x3]
    %v885 = vlaneseq
    %v886 = vshrl.u32 %v885, 7
    %v887 = vsub.s32 0, %v886
    %v888 = vrot.slane %v883, %v887
    %v889 = vlaneseq
    %v890 = vshrl.u32 %v889, 7
    %v891 = vsub.s32 1, %v890
    %v892 = vrot.slane %v883, %v891
    %v911 = vunpack.c.l.b16 %v867
    %v912 = vunpack.c.h.b16 %v867
    %v913 = vunpack.c.l.b16 %v868
    %v914 = vunpack.c.h.b16 %v868
    %v915 = vunpack.c.l.b16 %v869
    %v916 = vunpack.c.h.b16 %v869
    %v917 = vunpack.c.l.b16 %v870
    %v918 = vunpack.c.h.b16 %v870
    %v919 = vunpack.c.l.b16 %v871
    %v920 = vunpack.c.h.b16 %v871
    %v921 = vunpack.c.l.b16 %v872
    %v922 = vunpack.c.h.b16 %v872
    %v923 = vunpack.c.l.b16 %v873
    %v924 = vunpack.c.h.b16 %v873
    %v925 = vunpack.c.l.b16 %v874
    %v926 = vunpack.c.h.b16 %v874
    %v927 = vunpack.c.l.b16 %v875
    %v928 = vunpack.c.h.b16 %v875
    %v929 = vunpack.c.l.b16 %v876
    %v930 = vunpack.c.h.b16 %v876
    %v931 = vunpack.c.l.b16 %v877
    %v932 = vunpack.c.h.b16 %v877
    %v933 = vunpack.c.l.b16 %v878
    %v934 = vunpack.c.h.b16 %v878
    %v935 = vunpack.c.l.b16 %v879
    %v936 = vunpack.c.h.b16 %v879
    %v937 = vunpack.c.l.b16 %v880
    %v938 = vunpack.c.h.b16 %v880
    %v939 = vunpack.c.l.b16 %v881
    %v940 = vunpack.c.h.b16 %v881
    %v941 = vunpack.c.l.b16 %v882
    %v942 = vunpack.c.h.b16 %v882
    %v943 = vpack.c.b16 %v913, %v911
    %v944 = vpack.c.b16 %v914, %v912
    %v945 = vpack.c.b16 %v917, %v915
    %v946 = vpack.c.b16 %v918, %v916
    %v947 = vpack.c.b16 %v921, %v919
    %v948 = vpack.c.b16 %v922, %v920
    %v949 = vpack.c.b16 %v925, %v923
    %v950 = vpack.c.b16 %v926, %v924
    %v951 = vpack.c.b16 %v929, %v927
    %v952 = vpack.c.b16 %v930, %v928
    %v953 = vpack.c.b16 %v933, %v931
    %v954 = vpack.c.b16 %v934, %v932
    %v955 = vpack.c.b16 %v937, %v935
    %v956 = vpack.c.b16 %v938, %v936
    %v957 = vpack.c.b16 %v941, %v939
    %v958 = vpack.c.b16 %v942, %v940
    %975 = vmatprep.subr.bf16.mxu0 %v958
    %976 = vmatpush1.bf16.msra.mxu0 %v957
    %977 = vmatprep.subr.bf16.mxu0 %v956
    %978 = vmatpush1.bf16.msra.mxu0 %v955
    %979 = vmatprep.subr.bf16.mxu0 %v954
    %980 = vmatpush1.bf16.msra.mxu0 %v953
    %981 = vmatprep.subr.bf16.mxu0 %v952
    %982 = vmatpush1.bf16.msra.mxu0 %v951
    %983 = vmatprep.subr.bf16.mxu0 %v950
    %984 = vmatpush1.bf16.msra.mxu0 %v949
    %985 = vmatprep.subr.bf16.mxu0 %v948
    %986 = vmatpush1.bf16.msra.mxu0 %v947
    %987 = vmatprep.subr.bf16.mxu0 %v946
    %988 = vmatpush1.bf16.msra.mxu0 %v945
    %989 = vmatprep.subr.bf16.mxu0 %v944
    %990 = vmatpush1.bf16.msra.mxu0 %v943
    %991 = vmatprep.subr.bf16.mxu0 0
    %992 = vmatpush2.bf16.msra.mxu0 0
    %993 = vmatprep.subr.bf16.mxu0 0
    %994 = vmatpush2.bf16.msra.mxu0 0
    %995 = vmatprep.subr.bf16.mxu0 0
    %996 = vmatpush2.bf16.msra.mxu0 0
    %997 = vmatprep.subr.bf16.mxu0 0
    %998 = vmatpush2.bf16.msra.mxu0 0
    %999 = vmatprep.subr.bf16.mxu0 0
    %1000 = vmatpush2.bf16.msra.mxu0 0
    %1001 = vmatprep.subr.bf16.mxu0 0
    %1002 = vmatpush2.bf16.msra.mxu0 0
    %1003 = vmatprep.subr.bf16.mxu0 0
    %1004 = vmatpush2.bf16.msra.mxu0 0
    %1005 = vmatprep.subr.bf16.mxu0 0
    %1006 = vmatpush2.bf16.msra.mxu0 0
    %1007 = vmatprep.mubr.bf16.mxu0 0
    %1008 = vmatmul.mubr.bf16.gmra.mxu0 %v859
    %v1009 = vpop.f32.mrf.mxu0
    %v1010 = vadd.f32 %v888, %v1009
    %v1011 = vpop.f32.mrf.mxu0
    %v1012 = vadd.f32 %v892, %v1011
    %v1013 = vpop.f32.mrf.mxu0
    %v1014 = vadd.f32 %v888, %v1013
    %v1015 = vpop.f32.mrf.mxu0
    %v1016 = vadd.f32 %v892, %v1015
    %1017 = vmatprep.mubr.bf16.mxu0 0
    %1018 = vmatmul.mubr.bf16.gmra.mxu0 %v860
    %v1019 = vpop.f32.mrf.mxu0
    %v1020 = vadd.f32 %v888, %v1019
    %v1021 = vpop.f32.mrf.mxu0
    %v1022 = vadd.f32 %v892, %v1021
    %v1023 = vpop.f32.mrf.mxu0
    %v1024 = vadd.f32 %v888, %v1023
    %v1025 = vpop.f32.mrf.mxu0
    %v1026 = vadd.f32 %v892, %v1025
    %1027 = vmatprep.mubr.bf16.mxu0 0
    %1028 = vmatmul.mubr.bf16.gmra.mxu0 %v861
    %v1029 = vpop.f32.mrf.mxu0
    %v1030 = vadd.f32 %v888, %v1029
    %v1031 = vpop.f32.mrf.mxu0
    %v1032 = vadd.f32 %v892, %v1031
    %v1033 = vpop.f32.mrf.mxu0
    %v1034 = vadd.f32 %v888, %v1033
    %v1035 = vpop.f32.mrf.mxu0
    %v1036 = vadd.f32 %v892, %v1035
    %1037 = vmatprep.mubr.bf16.mxu0 0
    %1038 = vmatmul.mubr.bf16.gmra.mxu0 %v862
    %v1039 = vpop.f32.mrf.mxu0
    %v1040 = vadd.f32 %v888, %v1039
    %v1041 = vpop.f32.mrf.mxu0
    %v1042 = vadd.f32 %v892, %v1041
    %v1043 = vpop.f32.mrf.mxu0
    %v1044 = vadd.f32 %v888, %v1043
    %v1045 = vpop.f32.mrf.mxu0
    %v1046 = vadd.f32 %v892, %v1045
    %1047 = vmatprep.mubr.bf16.mxu0 0
    %1048 = vmatmul.mubr.bf16.gmra.mxu0 %v863
    %v1049 = vpop.f32.mrf.mxu0
    %v1050 = vadd.f32 %v888, %v1049
    %v1051 = vpop.f32.mrf.mxu0
    %v1052 = vadd.f32 %v892, %v1051
    %v1053 = vpop.f32.mrf.mxu0
    %v1054 = vadd.f32 %v888, %v1053
    %v1055 = vpop.f32.mrf.mxu0
    %v1056 = vadd.f32 %v892, %v1055
    %1057 = vmatprep.mubr.bf16.mxu0 0
    %1058 = vmatmul.mubr.bf16.gmra.mxu0 %v864
    %v1059 = vpop.f32.mrf.mxu0
    %v1060 = vadd.f32 %v888, %v1059
    %v1061 = vpop.f32.mrf.mxu0
    %v1062 = vadd.f32 %v892, %v1061
    %v1063 = vpop.f32.mrf.mxu0
    %v1064 = vadd.f32 %v888, %v1063
    %v1065 = vpop.f32.mrf.mxu0
    %v1066 = vadd.f32 %v892, %v1065
    %1067 = vmatprep.mubr.bf16.mxu0 0
    %1068 = vmatmul.mubr.bf16.gmra.mxu0 %v865
    %v1069 = vpop.f32.mrf.mxu0
    %v1070 = vadd.f32 %v888, %v1069
    %v1071 = vpop.f32.mrf.mxu0
    %v1072 = vadd.f32 %v892, %v1071
    %v1073 = vpop.f32.mrf.mxu0
    %v1074 = vadd.f32 %v888, %v1073
    %v1075 = vpop.f32.mrf.mxu0
    %v1076 = vadd.f32 %v892, %v1075
    %1077 = vmatprep.mubr.bf16.mxu0 0
    %1078 = vmatmul.mubr.bf16.gmra.mxu0 %v866
    %v1079 = vpop.f32.mrf.mxu0
    %v1080 = vadd.f32 %v888, %v1079
    %v1081 = vpop.f32.mrf.mxu0
    %v1082 = vadd.f32 %v892, %v1081
    %v1083 = vpop.f32.mrf.mxu0
    %v1084 = vadd.f32 %v888, %v1083
    %v1085 = vpop.f32.mrf.mxu0
    %v1086 = vadd.f32 %v892, %v1085
    %1087 = vdwg.mxu0
    %v1088 = vpack.c.bf16 %v1014, %v1010
    %v1089 = vpack.c.bf16 %v1016, %v1012
    %v1090 = vpack.c.bf16 %v1024, %v1020
    %v1091 = vpack.c.bf16 %v1026, %v1022
    %v1092 = vpack.c.bf16 %v1034, %v1030
    %v1093 = vpack.c.bf16 %v1036, %v1032
    %v1094 = vpack.c.bf16 %v1044, %v1040
    %v1095 = vpack.c.bf16 %v1046, %v1042
    %v1096 = vpack.c.bf16 %v1054, %v1050
    %v1097 = vpack.c.bf16 %v1056, %v1052
    %v1098 = vpack.c.bf16 %v1064, %v1060
    %v1099 = vpack.c.bf16 %v1066, %v1062
    %v1100 = vpack.c.bf16 %v1074, %v1070
    %v1101 = vpack.c.bf16 %v1076, %v1072
    %v1102 = vpack.c.bf16 %v1084, %v1080
    %v1103 = vpack.c.bf16 %v1086, %v1082
    %v1120 = vunpack.c.l.b16 %v1088
    %v1121 = vunpack.c.l.b16 %v1089
    %v1122 = vunpack.c.h.b16 %v1088
    %v1123 = vunpack.c.h.b16 %v1089
    %v1124 = vunpack.c.l.b16 %v1090
    %v1125 = vunpack.c.l.b16 %v1091
    %v1126 = vunpack.c.h.b16 %v1090
    %v1127 = vunpack.c.h.b16 %v1091
    %v1128 = vunpack.c.l.b16 %v1092
    %v1129 = vunpack.c.l.b16 %v1093
    %v1130 = vunpack.c.h.b16 %v1092
    %v1131 = vunpack.c.h.b16 %v1093
    %v1132 = vunpack.c.l.b16 %v1094
    %v1133 = vunpack.c.l.b16 %v1095
    %v1134 = vunpack.c.h.b16 %v1094
    %v1135 = vunpack.c.h.b16 %v1095
    %v1136 = vunpack.c.l.b16 %v1096
    %v1137 = vunpack.c.l.b16 %v1097
    %v1138 = vunpack.c.h.b16 %v1096
    %v1139 = vunpack.c.h.b16 %v1097
    %v1140 = vunpack.c.l.b16 %v1098
    %v1141 = vunpack.c.l.b16 %v1099
    %v1142 = vunpack.c.h.b16 %v1098
    %v1143 = vunpack.c.h.b16 %v1099
    %v1144 = vunpack.c.l.b16 %v1100
    %v1145 = vunpack.c.l.b16 %v1101
    %v1146 = vunpack.c.h.b16 %v1100
    %v1147 = vunpack.c.h.b16 %v1101
    %v1148 = vunpack.c.l.b16 %v1102
    %v1149 = vunpack.c.l.b16 %v1103
    %v1150 = vunpack.c.h.b16 %v1102
    %v1151 = vunpack.c.h.b16 %v1103
    %v1152 = vpack.c.b16 %v1121, %v1120
    %v1153 = vpack.c.b16 %v1123, %v1122
    %v1154 = vpack.c.b16 %v1125, %v1124
    %v1155 = vpack.c.b16 %v1127, %v1126
    %v1156 = vpack.c.b16 %v1129, %v1128
    %v1157 = vpack.c.b16 %v1131, %v1130
    %v1158 = vpack.c.b16 %v1133, %v1132
    %v1159 = vpack.c.b16 %v1135, %v1134
    %v1160 = vpack.c.b16 %v1137, %v1136
    %v1161 = vpack.c.b16 %v1139, %v1138
    %v1162 = vpack.c.b16 %v1141, %v1140
    %v1163 = vpack.c.b16 %v1143, %v1142
    %v1164 = vpack.c.b16 %v1145, %v1144
    %v1165 = vpack.c.b16 %v1147, %v1146
    %v1166 = vpack.c.b16 %v1149, %v1148
    %v1167 = vpack.c.b16 %v1151, %v1150
    %1184 = vst [vmem:[#allocation14] sm:$0xff] %v1152
    %1185 = vst [vmem:[#allocation14 + $0x8] sm:$0xff] %v1153
    %1186 = vst [vmem:[#allocation14 + $0x10] sm:$0xff] %v1154
    %1187 = vst [vmem:[#allocation14 + $0x18] sm:$0xff] %v1155
    %1188 = vst [vmem:[#allocation14 + $0x20] sm:$0xff] %v1156
    %1189 = vst [vmem:[#allocation14 + $0x28] sm:$0xff] %v1157
    %1190 = vst [vmem:[#allocation14 + $0x30] sm:$0xff] %v1158
    %1191 = vst [vmem:[#allocation14 + $0x38] sm:$0xff] %v1159
    %1192 = vst [vmem:[#allocation14 + $0x40] sm:$0xff] %v1160
    %1193 = vst [vmem:[#allocation14 + $0x48] sm:$0xff] %v1161
    %1194 = vst [vmem:[#allocation14 + $0x50] sm:$0xff] %v1162
    %1195 = vst [vmem:[#allocation14 + $0x58] sm:$0xff] %v1163
    %1196 = vst [vmem:[#allocation14 + $0x60] sm:$0xff] %v1164
    %1197 = vst [vmem:[#allocation14 + $0x68] sm:$0xff] %v1165
    %1198 = vst [vmem:[#allocation14 + $0x70] sm:$0xff] %v1166
    %1199 = vst [vmem:[#allocation14 + $0x78] sm:$0xff] %v1167
    // Predicated region
    $region66: #{tpu_custom_call.1} parent=1 // pred_check
      _
    $region67: #{tpu_custom_call.1} parent=1 // pred_check_branch
      %1201 = sbr.rel (0) target = $region69
    $region68: #{tpu_custom_call.1} parent=1 // pred_region
      %s1203 = ssub.s32 2048, 2048
      %1204 = vsyncadd [#allocation4], %s1203
      %s1205 = sshll.u32 [#allocation14], 4
      %s1206 = int_to_ptr.vmem [resolvable:$true] %s1205
      %1211 = dma.vmem_to_hbm [thread:$0]  %s1206, 2048, %s9, [#allocation4], 128, 128, 8
    $region69: #{tpu_custom_call.1} parent=1 // pred_fallthru
      _
    // Predicated region
    $region70: #{tpu_custom_call.1} parent=1 // pred_check
      _
    $region71: #{tpu_custom_call.1} parent=1 // pred_check_branch
      %1213 = sbr.rel (0) target = $region73
    $region72: #{tpu_custom_call.1} parent=1 // pred_region
      %1214 = dma.done [#allocation4], 2048
    $region73: #{tpu_custom_call.1} parent=1 // pred_fallthru
      _
    %1215 = vsyncpa [#allocation3], 1
    %1216 = vsyncpa [#allocation6], 1
    %1217 = vsyncpa [#allocation9], 1
    %1218 = vsyncpa [#allocation12], 1
    %1219 = vsyncpa [#allocation4], 1

</llo_original>
